<compile_context>
chip_gen: v7x
topology: tpu7x:2x2x1
jax: 0.10.0
libtpu: 0.0.40
codegen_flags: <defaults>
</compile_context>

<pallas_src>
import math
import functools

import jax
import jax.numpy as jnp
from jax import lax
from jax.experimental import pallas as pl
from jax.experimental.pallas import tpu as pltpu


# ---------------------------------------------------------------------------
# Pallas kernel: one (batch, time-tile) per grid step.
# ---------------------------------------------------------------------------
def _res_glu_kernel(*refs, kernel_size, dilation, pad, hwin, hin, half, skip_ch,
                    has_halo, fuse_taps, bf16_glu):
    """Refs (block shapes):
      xc_ref : (1, tT, Cres)      current x tile (native dtype; residual source)
      xh_ref : (1, hin, Cres)     halo stream (only when has_halo)
      c_ref  : (1, tT, Cin)       local conditioning tile (matmul dtype)
      bias   : (1, 1, gate)       per-batch bias (conv bias + global-cond 1x1), f32
      wx_ref : (K*Cres, gate) if fuse_taps else (K, Cres, gate)
      wc_ref : (Cin, gate)
      wso    : (half, Skip+Cres)  fused skip/out weights
      bso    : (1, Skip+Cres)     fused skip/out bias, f32
      out_ref: (1, tT, Cres)      skip_ref: (1, tT, Skip)
      win_ref: (hwin + tT, Cres)  VMEM scratch window (causal context + tile)
    """
    if has_halo:
        (xc_ref, xh_ref, c_ref, bias_ref, wx_ref, wc_ref, wso_ref, bso_ref,
         out_ref, skip_ref, win_ref) = refs
    else:
        (xc_ref, c_ref, bias_ref, wx_ref, wc_ref, wso_ref, bso_ref,
         out_ref, skip_ref, win_ref) = refs
        xh_ref = None

    t = pl.program_id(1)
    tT = xc_ref.shape[1]
    cres = xc_ref.shape[2]
    mm_dtype = win_ref.dtype

    # --- stage the causal window: [left context | current tile] --------------
    # Residual keeps the unquantized x; only the window (matmul operand) is
    # cast to the matmul dtype.
    x_cur = xc_ref[0]                                    # (tT, Cres), native dtype
    win_ref[pl.ds(hwin, tT), :] = x_cur.astype(mm_dtype)   # hwin % 8 == 0

    if pad > 0:
        if has_halo:
            @pl.when(t > 0)
            def _():
                # last `pad` rows just before the current tile
                win_ref[pl.ds(hwin - pad, pad), :] = (
                    xh_ref[0, hin - pad:, :].astype(mm_dtype))

            @pl.when(t == 0)
            def _():
                win_ref[pl.ds(hwin - pad, pad), :] = jnp.zeros((pad, cres), mm_dtype)
        else:
            win_ref[pl.ds(hwin - pad, pad), :] = jnp.zeros((pad, cres), mm_dtype)

    # --- gate-wide pre-activation: conv + local conditioning + bias ----------
    # GLU 'a'/'b' halves are fused into one gate-wide N; split by slicing y.
    y = jnp.dot(c_ref[0], wc_ref[...], preferred_element_type=jnp.float32)

    taps = [win_ref[pl.ds(hwin - pad + k * dilation, tT), :]
            for k in range(kernel_size)]
    if fuse_taps:
        # im2col: single (tT, K*Cres) @ (K*Cres, gate) matmul fills the MXU
        # contraction depth instead of K shallow Cres-deep matmuls.
        col = taps[0] if kernel_size == 1 else jnp.concatenate(taps, axis=-1)
        y = y + jnp.dot(col, wx_ref[...], preferred_element_type=jnp.float32)
    else:
        for k in range(kernel_size):
            y = y + jnp.dot(taps[k], wx_ref[k], preferred_element_type=jnp.float32)

    y = y + bias_ref[0]             # conv bias + folded global-conditioning 1x1

    # --- GLU gate -------------------------------------------------------------
    a = y[:, :half]
    b = y[:, half:]
    if bf16_glu:                    # v6e/v7x only: bf16 EUP has ~2x throughput
        a = a.astype(jnp.bfloat16)
        b = b.astype(jnp.bfloat16)
    h = jnp.tanh(a) * jax.nn.sigmoid(b)
    hm = h.astype(mm_dtype)

    # --- fused skip/out 1x1 convs + residual merge ------------------------------
    so = jnp.dot(hm, wso_ref[...], preferred_element_type=jnp.float32) + bso_ref[...]
    s = so[:, :skip_ch]
    o = so[:, skip_ch:]

    res = x_cur.astype(jnp.float32)                      # unquantized residual
    out_ref[0] = ((o + res) * math.sqrt(0.5)).astype(out_ref.dtype)
    skip_ref[0] = s.astype(skip_ref.dtype)


# ---------------------------------------------------------------------------
# Time-tiling / VMEM helpers.
# ---------------------------------------------------------------------------
def _round_up(x, m):
    return ((x + m - 1) // m) * m


def _halo_granule(tile, pad):
    """Smallest multiple of 8 that divides `tile` and is >= pad (None if none)."""
    for h in range(8, tile + 1, 8):
        if tile % h == 0 and h >= pad:
            return h
    return None


def _vmem_budget_bytes():
    """Generation-aware VMEM budget (leave ~25% headroom)."""
    cap = 64 * 1024 * 1024
    try:
        info = pltpu.get_tpu_info()
        cap = int(getattr(info, "vmem_capacity_bytes", cap))
    except Exception:
        pass
    # 128 MiB parts (v5e/v6e) -> ~96 MiB; 64 MiB parts (v7x) -> 48 MiB.
    return min(int(0.75 * cap), 100 * 1024 * 1024)


def _select_time_tile(T, pad, max_tile, budget, footprint):
    """Return (tile, halo_in, num_tiles)."""
    # Whole sequence per batch if it fits: no halo stream, no per-t-step grid
    # overhead (~0.35 us/step).
    if T <= max_tile and footprint(T, 0, False) <= budget:
        return T, 8, 1
    valid = []
    for tile in range(8, T, 8):
        if T % tile or tile > max_tile:
            continue
        h = _halo_granule(tile, pad)
        if h is not None:
            valid.append((tile, h))
    fitting = [(tile, h) for tile, h in valid if footprint(tile, h, True) <= budget]
    if fitting:
        tile, h = max(fitting)          # largest tile that fits the budget
        return tile, h, T // tile
    if valid:
        tile, h = min(valid)            # smallest valid tile (least VMEM)
        return tile, h, T // tile
    return T, 8, 1                      # single-tile fallback


# ---------------------------------------------------------------------------
# Core wrapper in kernel-native (B, T, C) layout.
# ---------------------------------------------------------------------------
def residual_conv1d_glu_btc(x_btc, c_btc, g_vec, params, *, kernel_size, dilation,
                            time_tile=None, max_time_tile=4096, bf16_glu=False,
                            out_dtype=None):
    """x_btc:(B,T,Cres)  c_btc:(B,T,Cin)  g_vec:(B,Gin)  ->  ((B,T,Cres),(B,T,Skip))

    `bf16_glu=True` runs tanh/sigmoid in bf16 (v6e/v7x only).
    `out_dtype` lets a bf16 stack halve output HBM traffic; default = x dtype.
    """
    B, T, Cres = x_btc.shape
    Cin = c_btc.shape[2]
    K = kernel_size
    pad = (K - 1) * dilation
    mm_dtype = params["w_conv"].dtype          # (K, Cres, gate)
    gate = params["w_conv"].shape[2]
    half = gate // 2
    Skip = params["w_so"].shape[1] - Cres
    in_dtype = x_btc.dtype
    out_dtype = in_dtype if out_dtype is None else out_dtype
    fuse_taps = (Cres % 128 == 0)              # lane-aligned im2col segments

    in_b = jnp.dtype(in_dtype).itemsize
    mm_b = jnp.dtype(mm_dtype).itemsize
    ob = jnp.dtype(out_dtype).itemsize
    budget = _vmem_budget_bytes()

    def footprint(tile, h, multi):
        hw = _round_up(pad, 8)
        streams = 2 * (tile * Cres * in_b + (h * Cres * in_b if multi else 0)
                       + tile * Cin * mm_b + gate * 4)
        weights = 2 * ((K * Cres * gate + Cin * gate + half * (Skip + Cres)) * mm_b
                       + (Skip + Cres) * 4)
        outs = 2 * (tile * Cres + tile * Skip) * ob
        scratch = (hw + tile) * Cres * mm_b
        temps = tile * (K * Cres + Cin) * mm_b + tile * gate * 4   # im2col/gate values
        return streams + weights + outs + scratch + temps

    # --- time tiling -----------------------------------------------------------
    if time_tile is None:
        tT, hin, nT = _select_time_tile(T, pad, max_time_tile, budget, footprint)
    else:
        tT = int(time_tile)
        if tT == T:
            nT, hin = 1, 8
        else:
            if T % tT != 0 or tT % 8 != 0:
                raise ValueError(f"time_tile={tT} must divide T={T} and be a multiple of 8")
            nT = T // tT
            hin = _halo_granule(tT, pad) if pad > 0 else 8
            if hin is None:
                raise ValueError(f"time_tile={tT} cannot host the causal halo pad={pad}")
    has_halo = (nT > 1) and (pad > 0)
    hwin = _round_up(pad, 8)
    r = (tT // hin) if has_halo else 1

    # --- per-batch bias: conv bias + global-conditioning 1x1 (time-invariant g) -
    g32 = g_vec.astype(jnp.float32)
    bias = (params["b_conv"][None, :]
            + jnp.einsum("bg,gh->bh", g32, params["w_g"],
                         precision=lax.Precision.HIGHEST))[:, None, :]   # (B,1,gate)

    c_mm = c_btc.astype(mm_dtype)
    wx = params["w_conv"].reshape(K * Cres, gate) if fuse_taps else params["w_conv"]
    wc = params["w_c"]
    wso = params["w_so"]
    bso = params["b_so"]

    est = footprint(tT, hin if has_halo else 0, has_halo)
    vmem_limit = int(min(max(int(1.5 * est), 32 * 1024 * 1024), budget))

    kernel = functools.partial(
        _res_glu_kernel, kernel_size=K, dilation=dilation, pad=pad, hwin=hwin,
        hin=hin, half=half, skip_ch=Skip, has_halo=has_halo,
        fuse_taps=fuse_taps, bf16_glu=bf16_glu)

    in_specs = [pl.BlockSpec((1, tT, Cres), lambda b, t: (b, t, 0))]   # x tile
    inputs = [x_btc]
    if has_halo:
        in_specs.append(pl.BlockSpec(
            (1, hin, Cres), lambda b, t: (b, jnp.maximum(t * r - 1, 0), 0)))
        inputs.append(x_btc)
    in_specs += [
        pl.BlockSpec((1, tT, Cin), lambda b, t: (b, t, 0)),            # c
        pl.BlockSpec((1, 1, gate), lambda b, t: (b, 0, 0)),            # bias
        pl.BlockSpec(wx.shape, lambda b, t: (0,) * wx.ndim),           # conv weights
        pl.BlockSpec((Cin, gate), lambda b, t: (0, 0)),                # cond weights
        pl.BlockSpec((half, Skip + Cres), lambda b, t: (0, 0)),        # skip/out weights
        pl.BlockSpec((1, Skip + Cres), lambda b, t: (0, 0)),           # skip/out bias
    ]
    inputs += [c_mm, bias, wx, wc, wso, bso]

    out, skip = pl.pallas_call(
        kernel,
        out_shape=(jax.ShapeDtypeStruct((B, T, Cres), out_dtype),
                   jax.ShapeDtypeStruct((B, T, Skip), out_dtype)),
        grid=(B, nT),
        in_specs=in_specs,
        out_specs=(pl.BlockSpec((1, tT, Cres), lambda b, t: (b, t, 0)),
                   pl.BlockSpec((1, tT, Skip), lambda b, t: (b, t, 0))),
        scratch_shapes=[pltpu.VMEM((hwin + tT, Cres), mm_dtype)],
        compiler_params=pltpu.CompilerParams(
            dimension_semantics=("parallel", "parallel"),
            vmem_limit_bytes=vmem_limit),
    )(*inputs)
    return out, skip


# ---------------------------------------------------------------------------
# PyTorch-layout wrapper (B, C, T) in / out.
# For a full WaveNet stack, prefer residual_conv1d_glu_btc and keep activations
# in (B, T, C) to avoid per-layer transposes.
# ---------------------------------------------------------------------------
def residual_conv1d_glu(x, c, g, params, *, kernel_size, dilation,
                        time_tile=None, max_time_tile=4096, bf16_glu=False):
    """x:(B,Cres,T)  c:(B,Cin,T)  g:(B,Gin,T)|(B,Gin,1)|(B,Gin)"""
    # TODO(synk): global conditioning is assumed time-invariant (the module
    # passes an 'expanded' g); the 1x1 g-conv is folded into a per-batch bias.
    x_t = jnp.transpose(x, (0, 2, 1))
    c_t = jnp.transpose(c, (0, 2, 1))
    g_vec = g[:, :, 0] if g.ndim == 3 else g
    out, skip = residual_conv1d_glu_btc(
        x_t, c_t, g_vec, params, kernel_size=kernel_size, dilation=dilation,
        time_tile=time_tile, max_time_tile=max_time_tile, bf16_glu=bf16_glu)
    return jnp.transpose(out, (0, 2, 1)), jnp.transpose(skip, (0, 2, 1))


# ---------------------------------------------------------------------------
# Deterministic parameter init (kaiming_normal weights, zero biases,
# weight_norm reparam with g = ||v|| — i.e. w == v at init, like the module).
# ---------------------------------------------------------------------------
def _kaiming_normal(key, shape, fan_in):
    std = math.sqrt(2.0 / fan_in)
    return std * jax.random.normal(key, shape, dtype=jnp.float32)


def _weight_norm(v):
    norm = jnp.sqrt(jnp.sum(v * v, axis=tuple(range(1, v.ndim)), keepdims=True))
    return norm * v / norm


def init_params(key, *, residual_channels, gate_channels, kernel_size,
                skip_out_channels, cin_channels, gin_channels,
                mm_dtype=jnp.bfloat16):
    ks = jax.random.split(key, 5)
    half = gate_channels // 2

    # torch layouts: conv (Gate,Cres,K); 1x1 convs (Out,In,1).
    w_conv_t = _weight_norm(_kaiming_normal(
        ks[0], (gate_channels, residual_channels, kernel_size),
        fan_in=residual_channels * kernel_size))
    w_c_t = _weight_norm(_kaiming_normal(
        ks[1], (gate_channels, cin_channels, 1), fan_in=cin_channels))
    w_g_t = _weight_norm(_kaiming_normal(
        ks[2], (gate_channels, gin_channels, 1), fan_in=gin_channels))
    w_skip_t = _weight_norm(_kaiming_normal(
        ks[3], (skip_out_channels, half, 1), fan_in=half))
    w_out_t = _weight_norm(_kaiming_normal(
        ks[4], (residual_channels, half, 1), fan_in=half))

    b_conv = jnp.zeros((gate_channels,), jnp.float32)
    b_skip = jnp.zeros((skip_out_channels,), jnp.float32)
    b_out = jnp.zeros((residual_channels,), jnp.float32)

    torch_params = dict(w_conv=w_conv_t, b_conv=b_conv, w_c=w_c_t, w_g=w_g_t,
                        w_skip=w_skip_t, b_skip=b_skip, w_out=w_out_t, b_out=b_out)

    kernel_params = dict(
        w_conv=jnp.transpose(w_conv_t, (2, 1, 0)).astype(mm_dtype),        # (K,Cres,gate)
        w_c=w_c_t[:, :, 0].T.astype(mm_dtype),                             # (Cin,gate)
        w_g=w_g_t[:, :, 0].T.astype(jnp.float32),                          # (Gin,gate) f32
        b_conv=b_conv,                                                     # (gate,)
        w_so=jnp.concatenate([w_skip_t[:, :, 0].T, w_out_t[:, :, 0].T],
                             axis=1).astype(mm_dtype),                     # (half,Skip+Cres)
        b_so=jnp.concatenate([b_skip, b_out])[None, :],                    # (1,Skip+Cres)
    )
    return torch_params, kernel_params


# ---------------------------------------------------------------------------
# Pure-JAX reference in torch (B, C, T) layout.  `mm_dtype` mirrors the
# kernel's matmul-operand quantization so the comparison isolates kernel
# correctness.  Residual is added at full precision, like the module.
# ---------------------------------------------------------------------------
def reference(x, c, g, tp, *, kernel_size, dilation, mm_dtype=jnp.float32):
    q = lambda v: v.astype(mm_dtype).astype(jnp.float32)
    hp = lax.Precision.HIGHEST
    B, Cres, T = x.shape
    pad = (kernel_size - 1) * dilation
    gate = tp["w_conv"].shape[0]
    half = gate // 2

    residual = x.astype(jnp.float32)
    xq = q(x)
    cq = q(c)
    xpad = jnp.pad(xq, ((0, 0), (0, 0), (pad, 0)))
    y = jnp.zeros((B, gate, T), jnp.float32)
    for k in range(kernel_size):
        y = y + jnp.einsum("oi,bit->bot", q(tp["w_conv"][:, :, k]),
                           xpad[:, :, k * dilation:k * dilation + T], precision=hp)
    y = y + tp["b_conv"][None, :, None]
    y = y + jnp.einsum("oi,bit->bot", q(tp["w_c"][:, :, 0]), cq, precision=hp)
    y = y + jnp.einsum("oi,bit->bot", tp["w_g"][:, :, 0],
                       g.astype(jnp.float32), precision=hp)      # f32 (folded bias)
    a, b = y[:, :half], y[:, half:]
    h = jnp.tanh(a) * jax.nn.sigmoid(b)
    hq = q(h)
    s = jnp.einsum("oi,bit->bot", q(tp["w_skip"][:, :, 0]), hq, precision=hp) \
        + tp["b_skip"][None, :, None]
    o = jnp.einsum("oi,bit->bot", q(tp["w_out"][:, :, 0]), hq, precision=hp) \
        + tp["b_out"][None, :, None]
    out = (o + residual) * math.sqrt(0.5)
    return out, s


# ---------------------------------------------------------------------------
if __name__ == "__main__":
    # ----- Case 1: small channels (per-tap fallback path) ----------------------
    B, Cres, T = 2, 16, 16
    gate_channels, skip_channels = 32, 16
    cin_channels, gin_channels = 8, 4
    kernel_size, dilation = 3, 2

    key = jax.random.PRNGKey(0)
    kx, kc, kg, kparam = jax.random.split(key, 4)
    x = jax.random.normal(kx, (B, Cres, T), dtype=jnp.float32)
    c = jax.random.normal(kc, (B, cin_channels, T), dtype=jnp.float32)
    g_vec = jax.random.normal(kg, (B, gin_channels), dtype=jnp.float32)
    g = jnp.broadcast_to(g_vec[:, :, None], (B, gin_channels, T))

    torch_p, kern_p = init_params(
        kparam, residual_channels=Cres, gate_channels=gate_channels,
        kernel_size=kernel_size, skip_out_channels=skip_channels,
        cin_channels=cin_channels, gin_channels=gin_channels)

    ref_out, ref_skip = reference(x, c, g, torch_p, kernel_size=kernel_size,
                                  dilation=dilation, mm_dtype=jnp.bfloat16)

    # Multi-tile path (exercises the causal halo stream).
    out, skip = residual_conv1d_glu(x, c, g, kern_p, kernel_size=kernel_size,
                                    dilation=dilation, time_tile=8)
    jax.block_until_ready((out, skip))
    assert out.shape == (B, Cres, T) and skip.shape == (B, skip_channels, T)
    assert jnp.allclose(out, ref_out, atol=2e-3, rtol=2e-3)
    assert jnp.allclose(skip, ref_skip, atol=2e-3, rtol=2e-3)

    # Single-tile path (no halo stream).
    out1, skip1 = residual_conv1d_glu(x, c, g, kern_p, kernel_size=kernel_size,
                                      dilation=dilation, time_tile=T)
    jax.block_until_ready((out1, skip1))
    assert jnp.allclose(out1, ref_out, atol=2e-3, rtol=2e-3)
    assert jnp.allclose(skip1, ref_skip, atol=2e-3, rtol=2e-3)

    # ----- Case 2: 128-aligned channels (fused im2col + fused skip/out path) ---
    B2, Cres2, T2 = 1, 128, 64
    gate2, skip2_ch = 256, 128
    cin2, gin2 = 128, 16
    K2, dil2 = 3, 4

    k2 = jax.random.split(jax.random.PRNGKey(1), 4)
    x2 = jax.random.normal(k2[0], (B2, Cres2, T2), dtype=jnp.float32)
    c2 = jax.random.normal(k2[1], (B2, cin2, T2), dtype=jnp.float32)
    g2_vec = jax.random.normal(k2[2], (B2, gin2), dtype=jnp.float32)
    g2 = jnp.broadcast_to(g2_vec[:, :, None], (B2, gin2, T2))

    torch_p2, kern_p2 = init_params(
        k2[3], residual_channels=Cres2, gate_channels=gate2, kernel_size=K2,
        skip_out_channels=skip2_ch, cin_channels=cin2, gin_channels=gin2)

    ref_out2, ref_skip2 = reference(x2, c2, g2, torch_p2, kernel_size=K2,
                                    dilation=dil2, mm_dtype=jnp.bfloat16)

    # Multi-tile fused path.
    out2, skip2 = residual_conv1d_glu(x2, c2, g2, kern_p2, kernel_size=K2,
                                      dilation=dil2, time_tile=32)
    jax.block_until_ready((out2, skip2))
    assert out2.shape == (B2, Cres2, T2) and skip2.shape == (B2, skip2_ch, T2)
    assert jnp.allclose(out2, ref_out2, atol=5e-3, rtol=5e-3)
    assert jnp.allclose(skip2, ref_skip2, atol=5e-3, rtol=5e-3)

    # Auto tile selection (VMEM-budget driven; single-tile here).
    out3, skip3 = residual_conv1d_glu(x2, c2, g2, kern_p2, kernel_size=K2,
                                      dilation=dil2)
    jax.block_until_ready((out3, skip3))
    assert jnp.allclose(out3, ref_out2, atol=5e-3, rtol=5e-3)
    assert jnp.allclose(skip3, ref_skip2, atol=5e-3, rtol=5e-3)

    print("KERNEL_OK")
</pallas_src>

<mosaic_0001>
module attributes {stable_mosaic.version = 11 : i64} {
  func.func @_res_glu_kernel(%arg0: i32, %arg1: i32, %arg2: memref<1x8x16xf32, #tpu.memory_space<vmem>>, %arg3: memref<1x8x16xf32, #tpu.memory_space<vmem>>, %arg4: memref<1x8x8xbf16, #tpu.memory_space<vmem>>, %arg5: memref<1x1x32xf32, #tpu.memory_space<vmem>>, %arg6: memref<3x16x32xbf16, #tpu.memory_space<vmem>>, %arg7: memref<8x32xbf16, #tpu.memory_space<vmem>>, %arg8: memref<16x32xbf16, #tpu.memory_space<vmem>>, %arg9: memref<1x32xf32, #tpu.memory_space<vmem>>, %arg10: memref<1x8x16xf32, #tpu.memory_space<vmem>>, %arg11: memref<1x8x16xf32, #tpu.memory_space<vmem>>, %arg12: memref<16x16xbf16, #tpu.memory_space<vmem>>) attributes {dimension_semantics = [#tpu.dimension_semantics<parallel>, #tpu.dimension_semantics<parallel>], iteration_bounds = array<i64: 2, 2>, scalar_prefetch = 0 : i64, scratch_operands = 1 : i64, tpu.core_type = #tpu.core_type<tc>, window_params = [{transform_indices = @transform_0, window_bounds = array<i64: 1, 8, 16>}, {transform_indices = @transform_1, window_bounds = array<i64: 1, 8, 16>}, {transform_indices = @transform_2, window_bounds = array<i64: 1, 8, 8>}, {transform_indices = @transform_3, window_bounds = array<i64: 1, 1, 32>}, {pipeline_mode = #tpu.pipeline_mode<synchronous>, transform_indices = @transform_4, window_bounds = array<i64: 3, 16, 32>}, {pipeline_mode = #tpu.pipeline_mode<synchronous>, transform_indices = @transform_5, window_bounds = array<i64: 8, 32>}, {pipeline_mode = #tpu.pipeline_mode<synchronous>, transform_indices = @transform_6, window_bounds = array<i64: 16, 32>}, {pipeline_mode = #tpu.pipeline_mode<synchronous>, transform_indices = @transform_7, window_bounds = array<i64: 1, 32>}, {transform_indices = @transform_8, window_bounds = array<i64: 1, 8, 16>}, {transform_indices = @transform_9, window_bounds = array<i64: 1, 8, 16>}]} {
    %c0 = arith.constant 0 : index
    %c0_0 = arith.constant 0 : index
    %c0_1 = arith.constant 0 : index
    %0 = vector.load %arg2[%c0, %c0_0, %c0_1] : memref<1x8x16xf32, #tpu.memory_space<vmem>>, vector<1x8x16xf32>
    %1 = vector.shape_cast %0 : vector<1x8x16xf32> to vector<8x16xf32>
    %2 = arith.truncf %1 : vector<8x16xf32> to vector<8x16xbf16>
    %c8 = arith.constant 8 : index
    %c0_2 = arith.constant 0 : index
    %3 = vector.load %arg12[%c8, %c0_2] : memref<16x16xbf16, #tpu.memory_space<vmem>>, vector<8x16xbf16>
    tpu.vector_store %arg12[%c8, %c0_2], %2 {strides = array<i32>} : memref<16x16xbf16, #tpu.memory_space<vmem>>, vector<8x16xbf16>,
    %c0_i32 = arith.constant 0 : i32
    %4 = arith.cmpi sgt, %arg1, %c0_i32 : i32
    %5 = arith.extui %4 : i1 to i32
    %c0_i32_3 = arith.constant 0 : i32
    %6 = arith.cmpi ne, %5, %c0_i32_3 : i32
    scf.if %6 {
      %c0_41 = arith.constant 0 : index
      %c4_42 = arith.constant 4 : index
      %c0_43 = arith.constant 0 : index
      %59 = vector.load %arg3[%c0_41, %c4_42, %c0_43] : memref<1x8x16xf32, #tpu.memory_space<vmem>>, vector<1x4x16xf32>
      %60 = vector.shape_cast %59 : vector<1x4x16xf32> to vector<4x16xf32>
      %61 = arith.truncf %60 : vector<4x16xf32> to vector<4x16xbf16>
      %c4_44 = arith.constant 4 : index
      %c0_45 = arith.constant 0 : index
      %62 = vector.load %arg12[%c4_44, %c0_45] : memref<16x16xbf16, #tpu.memory_space<vmem>>, vector<4x16xbf16>
      tpu.vector_store %arg12[%c4_44, %c0_45], %61 {strides = array<i32>} : memref<16x16xbf16, #tpu.memory_space<vmem>>, vector<4x16xbf16>,
    } else {
    }
    %c0_i32_4 = arith.constant 0 : i32
    %7 = arith.cmpi eq, %arg1, %c0_i32_4 : i32
    %8 = arith.extui %7 : i1 to i32
    %c0_i32_5 = arith.constant 0 : i32
    %9 = arith.cmpi ne, %8, %c0_i32_5 : i32
    scf.if %9 {
      %cst_41 = arith.constant 0.000000e+00 : bf16
      %59 = vector.broadcast %cst_41 : bf16 to vector<4x16xbf16>
      %c4_42 = arith.constant 4 : index
      %c0_43 = arith.constant 0 : index
      %60 = vector.load %arg12[%c4_42, %c0_43] : memref<16x16xbf16, #tpu.memory_space<vmem>>, vector<4x16xbf16>
      tpu.vector_store %arg12[%c4_42, %c0_43], %59 {strides = array<i32>} : memref<16x16xbf16, #tpu.memory_space<vmem>>, vector<4x16xbf16>,
    } else {
    }
    %c0_6 = arith.constant 0 : index
    %c0_7 = arith.constant 0 : index
    %c0_8 = arith.constant 0 : index
    %10 = vector.load %arg4[%c0_6, %c0_7, %c0_8] : memref<1x8x8xbf16, #tpu.memory_space<vmem>>, vector<1x8x8xbf16>
    %11 = vector.shape_cast %10 : vector<1x8x8xbf16> to vector<8x8xbf16>
    %c0_9 = arith.constant 0 : index
    %c0_10 = arith.constant 0 : index
    %12 = vector.load %arg7[%c0_9, %c0_10] : memref<8x32xbf16, #tpu.memory_space<vmem>>, vector<8x32xbf16>
    %cst = arith.constant dense<0.000000e+00> : vector<8x32xf32>
    %13 = tpu.matmul %11, %12, %cst {dimension_numbers = #tpu.dot_dimension_numbers<[1], [0], [0], [1], [0, 0, 1, 1], [], []>} : vector<8x8xbf16>, vector<8x32xbf16>, vector<8x32xf32> -> vector<8x32xf32>
    %c4 = arith.constant 4 : index
    %c0_11 = arith.constant 0 : index
    %14 = vector.load %arg12[%c4, %c0_11] : memref<16x16xbf16, #tpu.memory_space<vmem>>, vector<8x16xbf16>
    %c6 = arith.constant 6 : index
    %c0_12 = arith.constant 0 : index
    %15 = vector.load %arg12[%c6, %c0_12] : memref<16x16xbf16, #tpu.memory_space<vmem>>, vector<8x16xbf16>
    %c8_13 = arith.constant 8 : index
    %c0_14 = arith.constant 0 : index
    %16 = vector.load %arg12[%c8_13, %c0_14] : memref<16x16xbf16, #tpu.memory_space<vmem>>, vector<8x16xbf16>
    %c0_15 = arith.constant 0 : index
    %c0_16 = arith.constant 0 : index
    %c0_17 = arith.constant 0 : index
    %17 = vector.load %arg6[%c0_15, %c0_16, %c0_17] : memref<3x16x32xbf16, #tpu.memory_space<vmem>>, vector<1x16x32xbf16>
    %18 = vector.shape_cast %17 : vector<1x16x32xbf16> to vector<16x32xbf16>
    %cst_18 = arith.constant dense<0.000000e+00> : vector<8x32xf32>
    %19 = tpu.matmul %14, %18, %cst_18 {dimension_numbers = #tpu.dot_dimension_numbers<[1], [0], [0], [1], [0, 0, 1, 1], [], []>} : vector<8x16xbf16>, vector<16x32xbf16>, vector<8x32xf32> -> vector<8x32xf32>
    %20 = arith.addf %13, %19 : vector<8x32xf32>
    %c1 = arith.constant 1 : index
    %c0_19 = arith.constant 0 : index
    %c0_20 = arith.constant 0 : index
    %21 = vector.load %arg6[%c1, %c0_19, %c0_20] : memref<3x16x32xbf16, #tpu.memory_space<vmem>>, vector<1x16x32xbf16>
    %22 = vector.shape_cast %21 : vector<1x16x32xbf16> to vector<16x32xbf16>
    %cst_21 = arith.constant dense<0.000000e+00> : vector<8x32xf32>
    %23 = tpu.matmul %15, %22, %cst_21 {dimension_numbers = #tpu.dot_dimension_numbers<[1], [0], [0], [1], [0, 0, 1, 1], [], []>} : vector<8x16xbf16>, vector<16x32xbf16>, vector<8x32xf32> -> vector<8x32xf32>
    %24 = arith.addf %20, %23 : vector<8x32xf32>
    %c2 = arith.constant 2 : index
    %c0_22 = arith.constant 0 : index
    %c0_23 = arith.constant 0 : index
    %25 = vector.load %arg6[%c2, %c0_22, %c0_23] : memref<3x16x32xbf16, #tpu.memory_space<vmem>>, vector<1x16x32xbf16>
    %26 = vector.shape_cast %25 : vector<1x16x32xbf16> to vector<16x32xbf16>
    %cst_24 = arith.constant dense<0.000000e+00> : vector<8x32xf32>
    %27 = tpu.matmul %16, %26, %cst_24 {dimension_numbers = #tpu.dot_dimension_numbers<[1], [0], [0], [1], [0, 0, 1, 1], [], []>} : vector<8x16xbf16>, vector<16x32xbf16>, vector<8x32xf32> -> vector<8x32xf32>
    %28 = arith.addf %24, %27 : vector<8x32xf32>
    %c0_25 = arith.constant 0 : index
    %c0_26 = arith.constant 0 : index
    %c0_27 = arith.constant 0 : index
    %29 = vector.load %arg5[%c0_25, %c0_26, %c0_27] : memref<1x1x32xf32, #tpu.memory_space<vmem>>, vector<1x1x32xf32>
    %30 = vector.shape_cast %29 : vector<1x1x32xf32> to vector<1x32xf32>
    %31 = vector.broadcast %30 : vector<1x32xf32> to vector<8x32xf32>
    %32 = arith.addf %28, %31 : vector<8x32xf32>
    %33 = vector.extract_strided_slice %32 {offsets = [0, 0], sizes = [8, 16], strides = [1, 1]} : vector<8x32xf32> to vector<8x16xf32>
    %34 = vector.extract_strided_slice %32 {offsets = [0, 16], sizes = [8, 16], strides = [1, 1]} : vector<8x32xf32> to vector<8x16xf32>
    %35 = math.tanh %33 : vector<8x16xf32>
    %36 = arith.negf %34 : vector<8x16xf32>
    %37 = math.exp %36 : vector<8x16xf32>
    %cst_28 = arith.constant 1.000000e+00 : f32
    %38 = vector.broadcast %cst_28 : f32 to vector<8x16xf32>
    %39 = arith.addf %38, %37 : vector<8x16xf32>
    %40 = arith.divf %38, %39 : vector<8x16xf32>
    %41 = arith.mulf %35, %40 : vector<8x16xf32>
    %42 = arith.truncf %41 : vector<8x16xf32> to vector<8x16xbf16>
    %c0_29 = arith.constant 0 : index
    %c0_30 = arith.constant 0 : index
    %43 = vector.load %arg8[%c0_29, %c0_30] : memref<16x32xbf16, #tpu.memory_space<vmem>>, vector<16x32xbf16>
    %cst_31 = arith.constant dense<0.000000e+00> : vector<8x32xf32>
    %44 = tpu.matmul %42, %43, %cst_31 {dimension_numbers = #tpu.dot_dimension_numbers<[1], [0], [0], [1], [0, 0, 1, 1], [], []>} : vector<8x16xbf16>, vector<16x32xbf16>, vector<8x32xf32> -> vector<8x32xf32>
    %c0_32 = arith.constant 0 : index
    %c0_33 = arith.constant 0 : index
    %45 = vector.load %arg9[%c0_32, %c0_33] : memref<1x32xf32, #tpu.memory_space<vmem>>, vector<1x32xf32>
    %46 = vector.broadcast %45 : vector<1x32xf32> to vector<8x32xf32>
    %47 = arith.addf %44, %46 : vector<8x32xf32>
    %48 = vector.extract_strided_slice %47 {offsets = [0, 0], sizes = [8, 16], strides = [1, 1]} : vector<8x32xf32> to vector<8x16xf32>
    %49 = vector.extract_strided_slice %47 {offsets = [0, 16], sizes = [8, 16], strides = [1, 1]} : vector<8x32xf32> to vector<8x16xf32>
    %50 = arith.addf %49, %1 : vector<8x16xf32>
    %cst_34 = arith.constant 0.707106769 : f32
    %51 = vector.broadcast %cst_34 : f32 to vector<8x16xf32>
    %52 = arith.mulf %50, %51 : vector<8x16xf32>
    %c0_35 = arith.constant 0 : index
    %c0_36 = arith.constant 0 : index
    %c0_37 = arith.constant 0 : index
    %53 = vector.load %arg10[%c0_35, %c0_36, %c0_37] : memref<1x8x16xf32, #tpu.memory_space<vmem>>, vector<1x8x16xf32>
    %54 = vector.shape_cast %53 : vector<1x8x16xf32> to vector<8x16xf32>
    %55 = vector.shape_cast %52 : vector<8x16xf32> to vector<1x8x16xf32>
    tpu.vector_store %arg10[%c0_35, %c0_36, %c0_37], %55 {strides = array<i32>} : memref<1x8x16xf32, #tpu.memory_space<vmem>>, vector<1x8x16xf32>,
    %c0_38 = arith.constant 0 : index
    %c0_39 = arith.constant 0 : index
    %c0_40 = arith.constant 0 : index
    %56 = vector.load %arg11[%c0_38, %c0_39, %c0_40] : memref<1x8x16xf32, #tpu.memory_space<vmem>>, vector<1x8x16xf32>
    %57 = vector.shape_cast %56 : vector<1x8x16xf32> to vector<8x16xf32>
    %58 = vector.shape_cast %48 : vector<8x16xf32> to vector<1x8x16xf32>
    tpu.vector_store %arg11[%c0_38, %c0_39, %c0_40], %58 {strides = array<i32>} : memref<1x8x16xf32, #tpu.memory_space<vmem>>, vector<1x8x16xf32>,
    return
  }
  func.func @transform_0(%arg0: i32, %arg1: i32) -> (i32, i32, i32) {
    %c0_i32 = arith.constant 0 : i32
    %c0_i32_0 = arith.constant 0 : i32
    return %arg0, %arg1, %c0_i32 : i32, i32, i32
  }
  func.func @transform_1(%arg0: i32, %arg1: i32) -> (i32, i32, i32) {
    %c1_i32 = arith.constant 1 : i32
    %0 = arith.muli %arg1, %c1_i32 : i32
    %c1_i32_0 = arith.constant 1 : i32
    %1 = arith.subi %0, %c1_i32_0 : i32
    %c0_i32 = arith.constant 0 : i32
    %2 = arith.maxsi %1, %c0_i32 : i32
    %c0_i32_1 = arith.constant 0 : i32
    %c0_i32_2 = arith.constant 0 : i32
    return %arg0, %2, %c0_i32_1 : i32, i32, i32
  }
  func.func @transform_2(%arg0: i32, %arg1: i32) -> (i32, i32, i32) {
    %c0_i32 = arith.constant 0 : i32
    %c0_i32_0 = arith.constant 0 : i32
    return %arg0, %arg1, %c0_i32 : i32, i32, i32
  }
  func.func @transform_3(%arg0: i32, %arg1: i32) -> (i32, i32, i32) {
    %c0_i32 = arith.constant 0 : i32
    %c0_i32_0 = arith.constant 0 : i32
    %c0_i32_1 = arith.constant 0 : i32
    return %arg0, %c0_i32, %c0_i32_0 : i32, i32, i32
  }
  func.func @transform_4(%arg0: i32, %arg1: i32) -> (i32, i32, i32) {
    %c0_i32 = arith.constant 0 : i32
    %c0_i32_0 = arith.constant 0 : i32
    %c0_i32_1 = arith.constant 0 : i32
    %c0_i32_2 = arith.constant 0 : i32
    return %c0_i32, %c0_i32_0, %c0_i32_1 : i32, i32, i32
  }
  func.func @transform_5(%arg0: i32, %arg1: i32) -> (i32, i32) {
    %c0_i32 = arith.constant 0 : i32
    %c0_i32_0 = arith.constant 0 : i32
    %c0_i32_1 = arith.constant 0 : i32
    return %c0_i32, %c0_i32_0 : i32, i32
  }
  func.func @transform_6(%arg0: i32, %arg1: i32) -> (i32, i32) {
    %c0_i32 = arith.constant 0 : i32
    %c0_i32_0 = arith.constant 0 : i32
    %c0_i32_1 = arith.constant 0 : i32
    return %c0_i32, %c0_i32_0 : i32, i32
  }
  func.func @transform_7(%arg0: i32, %arg1: i32) -> (i32, i32) {
    %c0_i32 = arith.constant 0 : i32
    %c0_i32_0 = arith.constant 0 : i32
    %c0_i32_1 = arith.constant 0 : i32
    return %c0_i32, %c0_i32_0 : i32, i32
  }
  func.func @transform_8(%arg0: i32, %arg1: i32) -> (i32, i32, i32) {
    %c0_i32 = arith.constant 0 : i32
    %c0_i32_0 = arith.constant 0 : i32
    return %arg0, %arg1, %c0_i32 : i32, i32, i32
  }
  func.func @transform_9(%arg0: i32, %arg1: i32) -> (i32, i32, i32) {
    %c0_i32 = arith.constant 0 : i32
    %c0_i32_0 = arith.constant 0 : i32
    return %arg0, %arg1, %c0_i32 : i32, i32, i32
  }
}

</mosaic_0001>

<llo_original>
// kernel: tpu_custom_call.1
$region0: #{tpu_custom_call.1}
  #allocation0 [shape = 'u32[]', space=smem, size = 0x4, offset = 0x4, fixed_abs, tag = 'smem constant byte address 0x4 - core index']
  #allocation1 [shape = 'u32[144,128]{1,0:T(1,128)}', space=vmem, size = 0x12000, scoped, tag = 'internal scratch']
  #allocation2 [shape = 'bf16[16,16]{1,0:T(16,128)(2,1)}', space=vmem, size = 0x1000, scoped, tag = 'scratch operand']
  %s0 = inlined_call_operand.hbm [shape: f32[2,16,16], index: 0, kind: input, shape index: {}]
  %s1 = inlined_call_operand.hbm [shape: f32[2,16,16], index: 1, kind: input, shape index: {}]
  %s2 = inlined_call_operand.vmem [shape: bf16[2,16,8], index: 2, kind: input, shape index: {}]
  %s3 = inlined_call_operand.vmem [shape: f32[2,1,32], index: 3, kind: input, shape index: {}]
  %s4 = inlined_call_operand.vmem [shape: bf16[3,16,32], index: 4, kind: input, shape index: {}]
  %s5 = inlined_call_operand.vmem [shape: bf16[8,32], index: 5, kind: input, shape index: {}]
  %s6 = inlined_call_operand.vmem [shape: bf16[16,32], index: 6, kind: input, shape index: {}]
  %s7 = inlined_call_operand.vmem [shape: f32[1,32], index: 7, kind: input, shape index: {}]
  %s8 = inlined_call_operand.hbm [shape: f32[2,16,16], index: 8, kind: output, shape index: {0}]
  %s9 = inlined_call_operand.hbm [shape: f32[2,16,16], index: 9, kind: output, shape index: {1}]
  %10 = xla_tuple %s8, %s9
  %s11 = sld [smem:[#allocation0]]
  $region89: #{tpu_custom_call.1} parent=0
    _
  %s13 = ssub.s32 1, %s11
  %s14 = scalar_select 0, %s13, %s11
  $region1: #{tpu_custom_call.1} parent=0
    #allocation3 [shape = 'u8[8192]{0}', space=vmem, size = 0x2000, scoped, tag = 'input window, operand 0']
    #allocation4 [shape = 's32[2]{0}', space=sflag, size = 0x8, scoped, tag = 'scoped memory for tpu_custom_call.1']
    #allocation5 [shape = 's32[2]{0}', space=sflag, size = 0x8, scoped, tag = 'scoped memory for tpu_custom_call.1']
    #allocation6 [shape = 'u8[8192]{0}', space=vmem, size = 0x2000, scoped, tag = 'input window, operand 1']
    #allocation7 [shape = 's32[2]{0}', space=sflag, size = 0x8, scoped, tag = 'scoped memory for tpu_custom_call.1']
    #allocation8 [shape = 'u8[8192]{0}', space=vmem, size = 0x2000, scoped, tag = 'output window, operand 0']
    #allocation9 [shape = 'u8[8192]{0}', space=vmem, size = 0x2000, scoped, tag = 'output window, operand 1']
    #allocation10 [shape = 's32[2]{0}', space=sflag, size = 0x8, scoped, tag = 'scoped memory for tpu_custom_call.1']
    %15 = vsyncpa [#allocation4], 0
    %s16 = scalar_lea.sflag [#allocation4], 1
    %17 = vsyncpa %s16, 0
    %18 = vsyncpa [#allocation7], 0
    %s19 = scalar_lea.sflag [#allocation7], 1
    %20 = vsyncpa %s19, 0
    %21 = vsyncpa [#allocation5], 0
    %s22 = scalar_lea.sflag [#allocation5], 1
    %23 = vsyncpa %s22, 0
    %24 = vsyncpa [#allocation10], 0
    %s25 = scalar_lea.sflag [#allocation10], 1
    %26 = vsyncpa %s25, 0
    loop: start=0, step=1, limit=6
    $region2: #{tpu_custom_call.1} parent=1 // loop_pre_header
      _
    $region3: #{tpu_custom_call.1} parent=1 // loop_header
      %s28 = sphi 0, %s32
      %p29 = scmp.ge.s32.totalorder %s28, 6
      %s35 = sphi 0, %s47
      %s36 = sphi 0, %s43
      %s37 = sphi 0, %s35
      %s38 = sphi 0, %s36
      %s39 = sphi 0, %s37
      %s40 = sphi 0, %s38
      %s52 = sphi 0, %s54
      %s55 = sphi 0, %s52
      %s56 = sphi 0, %s55
      %s72 = sphi 0, %s56
      %s86 = sphi 0, %s88
      %s89 = sphi 0, %s86
      %s90 = sphi 0, %s89
      %s106 = sphi 0, %s90
      %s114 = sphi 0, %s116
      %s117 = sphi 0, %s114
      %s118 = sphi 0, %s117
      %s134 = sphi 0, %s118
      %s140 = sphi 0, %s142
      %s143 = sphi 0, %s140
      %s144 = sphi 0, %s143
      %s160 = sphi 0, %s144
      %s164 = sphi 0, %s164
      %s166 = sphi 0, %s164
      %s167 = sphi 0, %s166
      %s181 = sphi 0, %s167
      %s185 = sphi 0, %s185
      %s187 = sphi 0, %s185
      %s188 = sphi 0, %s187
      %s202 = sphi 0, %s188
      %s206 = sphi 0, %s206
      %s208 = sphi 0, %s206
      %s209 = sphi 0, %s208
      %s223 = sphi 0, %s209
      %s227 = sphi 0, %s227
      %s229 = sphi 0, %s227
      %s230 = sphi 0, %s229
      %s244 = sphi 0, %s230
      %s252 = sphi 0, %s254
      %s255 = sphi 0, %s252
      %s256 = sphi 0, %s255
      %s272 = sphi 0, %s256
      %s280 = sphi 0, %s282
      %s283 = sphi 0, %s280
      %s284 = sphi 0, %s283
      %s300 = sphi 0, %s284
    $region4: #{tpu_custom_call.1} parent=1 // loop_header_branch
      %31 = sbr.rel (%p29) target = $region8
    $region5: #{tpu_custom_call.1} parent=1 // loop_body
      %s33 = ssub.s32 %s28, 1
      %s34 = ssub.s32 %s28, 2
      %s41 = sadd.s32 1, %s36
      %p42 = scmp.ge.s32.totalorder %s41, 2
      %s43 = scalar_select %p42, 0, %s41
      %s44 = sadd.s32 1, %s35
      %s45 = scalar_select %p42, %s44, %s35
      %p46 = scmp.ge.s32.totalorder %s45, 2
      %s47 = scalar_select %p46, 0, %s45
      %s48 = ssub.s32 %s35, %s47
      %s49 = ssub.s32 %s36, %s43
      %s50 = sor.u32 %s48, %s49
      %p51 = scmp.eq.s32.totalorder %s50, 0
      %s53 = sadd.s32 %s52, 1
      %s54 = scalar_select %p51, %s52, %s53
      %p57 = pneg %p51
      %p58 = scmp.eq.s32.totalorder %s28, 3
      %p59 = por %p57, %p58
      %p60 = scmp.ne.s32.totalorder %s52, %s55
      %p61 = scmp.eq.s32.totalorder %s28, 0
      %p62 = por %p60, %p61
      %p63 = scmp.ne.s32.totalorder %s52, %s55
      %p64 = scmp.eq.s32.totalorder %s33, 3
      %p65 = por %p63, %p64
      %p66 = scmp.ne.s32.totalorder %s55, %s56
      %p67 = scmp.eq.s32.totalorder %s33, 0
      %p68 = por %p66, %p67
      %p69 = scmp.ne.s32.totalorder %s55, %s56
      %p70 = scmp.eq.s32.totalorder %s34, 3
      %p71 = por %p69, %p70
      %p73 = scmp.ne.s32.totalorder %s56, %s72
      %p74 = scmp.eq.s32.totalorder %s34, 0
      %p75 = por %p73, %p74
      %s76 = ssub.s32 %s36, 1
      %p77 = scmp.gt.s32.totalorder %s76, 0
      %s78 = scalar_select %p77, %s76, 0
      %s79 = ssub.s32 %s43, 1
      %p80 = scmp.gt.s32.totalorder %s79, 0
      %s81 = scalar_select %p80, %s79, 0
      %s82 = ssub.s32 %s35, %s47
      %s83 = ssub.s32 %s78, %s81
      %s84 = sor.u32 %s82, %s83
      %p85 = scmp.eq.s32.totalorder %s84, 0
      %s87 = sadd.s32 %s86, 1
      %s88 = scalar_select %p85, %s86, %s87
      %p91 = pneg %p85
      %p92 = scmp.eq.s32.totalorder %s28, 3
      %p93 = por %p91, %p92
      %p94 = scmp.ne.s32.totalorder %s86, %s89
      %p95 = scmp.eq.s32.totalorder %s28, 0
      %p96 = por %p94, %p95
      %p97 = scmp.ne.s32.totalorder %s86, %s89
      %p98 = scmp.eq.s32.totalorder %s33, 3
      %p99 = por %p97, %p98
      %p100 = scmp.ne.s32.totalorder %s89, %s90
      %p101 = scmp.eq.s32.totalorder %s33, 0
      %p102 = por %p100, %p101
      %p103 = scmp.ne.s32.totalorder %s89, %s90
      %p104 = scmp.eq.s32.totalorder %s34, 3
      %p105 = por %p103, %p104
      %p107 = scmp.ne.s32.totalorder %s90, %s106
      %p108 = scmp.eq.s32.totalorder %s34, 0
      %p109 = por %p107, %p108
      %s110 = ssub.s32 %s35, %s47
      %s111 = ssub.s32 %s36, %s43
      %s112 = sor.u32 %s110, %s111
      %p113 = scmp.eq.s32.totalorder %s112, 0
      %s115 = sadd.s32 %s114, 1
      %s116 = scalar_select %p113, %s114, %s115
      %p119 = pneg %p113
      %p120 = scmp.eq.s32.totalorder %s28, 3
      %p121 = por %p119, %p120
      %p122 = scmp.ne.s32.totalorder %s114, %s117
      %p123 = scmp.eq.s32.totalorder %s28, 0
      %p124 = por %p122, %p123
      %p125 = scmp.ne.s32.totalorder %s114, %s117
      %p126 = scmp.eq.s32.totalorder %s33, 3
      %p127 = por %p125, %p126
      %p128 = scmp.ne.s32.totalorder %s117, %s118
      %p129 = scmp.eq.s32.totalorder %s33, 0
      %p130 = por %p128, %p129
      %p131 = scmp.ne.s32.totalorder %s117, %s118
      %p132 = scmp.eq.s32.totalorder %s34, 3
      %p133 = por %p131, %p132
      %p135 = scmp.ne.s32.totalorder %s118, %s134
      %p136 = scmp.eq.s32.totalorder %s34, 0
      %p137 = por %p135, %p136
      %s138 = ssub.s32 %s35, %s47
      %p139 = scmp.eq.s32.totalorder %s138, 0
      %s141 = sadd.s32 %s140, 1
      %s142 = scalar_select %p139, %s140, %s141
      %p145 = pneg %p139
      %p146 = scmp.eq.s32.totalorder %s28, 3
      %p147 = por %p145, %p146
      %p148 = scmp.ne.s32.totalorder %s140, %s143
      %p149 = scmp.eq.s32.totalorder %s28, 0
      %p150 = por %p148, %p149
      %p151 = scmp.ne.s32.totalorder %s140, %s143
      %p152 = scmp.eq.s32.totalorder %s33, 3
      %p153 = por %p151, %p152
      %p154 = scmp.ne.s32.totalorder %s143, %s144
      %p155 = scmp.eq.s32.totalorder %s33, 0
      %p156 = por %p154, %p155
      %p157 = scmp.ne.s32.totalorder %s143, %s144
      %p158 = scmp.eq.s32.totalorder %s34, 3
      %p159 = por %p157, %p158
      %p161 = scmp.ne.s32.totalorder %s144, %s160
      %p162 = scmp.eq.s32.totalorder %s34, 0
      %p163 = por %p161, %p162
      %s165 = sadd.s32 %s164, 1
      %p168 = scmp.eq.s32.totalorder %s28, 3
      %p169 = scmp.ne.s32.totalorder %s164, %s166
      %p170 = scmp.eq.s32.totalorder %s28, 0
      %p171 = por %p169, %p170
      %p172 = scmp.ne.s32.totalorder %s164, %s166
      %p173 = scmp.eq.s32.totalorder %s33, 3
      %p174 = por %p172, %p173
      %p175 = scmp.ne.s32.totalorder %s166, %s167
      %p176 = scmp.eq.s32.totalorder %s33, 0
      %p177 = por %p175, %p176
      %p178 = scmp.ne.s32.totalorder %s166, %s167
      %p179 = scmp.eq.s32.totalorder %s34, 3
      %p180 = por %p178, %p179
      %p182 = scmp.ne.s32.totalorder %s167, %s181
      %p183 = scmp.eq.s32.totalorder %s34, 0
      %p184 = por %p182, %p183
      %s186 = sadd.s32 %s185, 1
      %p189 = scmp.eq.s32.totalorder %s28, 3
      %p190 = scmp.ne.s32.totalorder %s185, %s187
      %p191 = scmp.eq.s32.totalorder %s28, 0
      %p192 = por %p190, %p191
      %p193 = scmp.ne.s32.totalorder %s185, %s187
      %p194 = scmp.eq.s32.totalorder %s33, 3
      %p195 = por %p193, %p194
      %p196 = scmp.ne.s32.totalorder %s187, %s188
      %p197 = scmp.eq.s32.totalorder %s33, 0
      %p198 = por %p196, %p197
      %p199 = scmp.ne.s32.totalorder %s187, %s188
      %p200 = scmp.eq.s32.totalorder %s34, 3
      %p201 = por %p199, %p200
      %p203 = scmp.ne.s32.totalorder %s188, %s202
      %p204 = scmp.eq.s32.totalorder %s34, 0
      %p205 = por %p203, %p204
      %s207 = sadd.s32 %s206, 1
      %p210 = scmp.eq.s32.totalorder %s28, 3
      %p211 = scmp.ne.s32.totalorder %s206, %s208
      %p212 = scmp.eq.s32.totalorder %s28, 0
      %p213 = por %p211, %p212
      %p214 = scmp.ne.s32.totalorder %s206, %s208
      %p215 = scmp.eq.s32.totalorder %s33, 3
      %p216 = por %p214, %p215
      %p217 = scmp.ne.s32.totalorder %s208, %s209
      %p218 = scmp.eq.s32.totalorder %s33, 0
      %p219 = por %p217, %p218
      %p220 = scmp.ne.s32.totalorder %s208, %s209
      %p221 = scmp.eq.s32.totalorder %s34, 3
      %p222 = por %p220, %p221
      %p224 = scmp.ne.s32.totalorder %s209, %s223
      %p225 = scmp.eq.s32.totalorder %s34, 0
      %p226 = por %p224, %p225
      %s228 = sadd.s32 %s227, 1
      %p231 = scmp.eq.s32.totalorder %s28, 3
      %p232 = scmp.ne.s32.totalorder %s227, %s229
      %p233 = scmp.eq.s32.totalorder %s28, 0
      %p234 = por %p232, %p233
      %p235 = scmp.ne.s32.totalorder %s227, %s229
      %p236 = scmp.eq.s32.totalorder %s33, 3
      %p237 = por %p235, %p236
      %p238 = scmp.ne.s32.totalorder %s229, %s230
      %p239 = scmp.eq.s32.totalorder %s33, 0
      %p240 = por %p238, %p239
      %p241 = scmp.ne.s32.totalorder %s229, %s230
      %p242 = scmp.eq.s32.totalorder %s34, 3
      %p243 = por %p241, %p242
      %p245 = scmp.ne.s32.totalorder %s230, %s244
      %p246 = scmp.eq.s32.totalorder %s34, 0
      %p247 = por %p245, %p246
      %s248 = ssub.s32 %s35, %s47
      %s249 = ssub.s32 %s36, %s43
      %s250 = sor.u32 %s248, %s249
      %p251 = scmp.eq.s32.totalorder %s250, 0
      %s253 = sadd.s32 %s252, 1
      %s254 = scalar_select %p251, %s252, %s253
      %p257 = pneg %p251
      %p258 = scmp.eq.s32.totalorder %s28, 3
      %p259 = por %p257, %p258
      %p260 = scmp.ne.s32.totalorder %s252, %s255
      %p261 = scmp.eq.s32.totalorder %s28, 0
      %p262 = por %p260, %p261
      %p263 = scmp.ne.s32.totalorder %s252, %s255
      %p264 = scmp.eq.s32.totalorder %s33, 3
      %p265 = por %p263, %p264
      %p266 = scmp.ne.s32.totalorder %s255, %s256
      %p267 = scmp.eq.s32.totalorder %s33, 0
      %p268 = por %p266, %p267
      %p269 = scmp.ne.s32.totalorder %s255, %s256
      %p270 = scmp.eq.s32.totalorder %s34, 3
      %p271 = por %p269, %p270
      %p273 = scmp.ne.s32.totalorder %s256, %s272
      %p274 = scmp.eq.s32.totalorder %s34, 0
      %p275 = por %p273, %p274
      %s276 = ssub.s32 %s35, %s47
      %s277 = ssub.s32 %s36, %s43
      %s278 = sor.u32 %s276, %s277
      %p279 = scmp.eq.s32.totalorder %s278, 0
      %s281 = sadd.s32 %s280, 1
      %s282 = scalar_select %p279, %s280, %s281
      %p285 = pneg %p279
      %p286 = scmp.eq.s32.totalorder %s28, 3
      %p287 = por %p285, %p286
      %p288 = scmp.ne.s32.totalorder %s280, %s283
      %p289 = scmp.eq.s32.totalorder %s28, 0
      %p290 = por %p288, %p289
      %p291 = scmp.ne.s32.totalorder %s280, %s283
      %p292 = scmp.eq.s32.totalorder %s33, 3
      %p293 = por %p291, %p292
      %p294 = scmp.ne.s32.totalorder %s283, %s284
      %p295 = scmp.eq.s32.totalorder %s33, 0
      %p296 = por %p294, %p295
      %p297 = scmp.ne.s32.totalorder %s283, %s284
      %p298 = scmp.eq.s32.totalorder %s34, 3
      %p299 = por %p297, %p298
      %p301 = scmp.ne.s32.totalorder %s284, %s300
      %p302 = scmp.eq.s32.totalorder %s34, 0
      %p303 = por %p301, %p302
      %p304 = scmp.le.s32.totalorder 1, %s28
      %p305 = scmp.lt.s32.totalorder %s28, 5
      %p306 = pnand %p304, %p305
      %p307 = pneg %p306
      // Predicated region
      $region9: #{tpu_custom_call.1} parent=5 // pred_check
        _
      $region10: #{tpu_custom_call.1} parent=5 // pred_check_branch
        %309 = sbr.rel (%p306) target = $region12
      $region11: #{tpu_custom_call.1} parent=5 // pred_region
        %s310 = ssub.s32 %s28, 1
        // Predicated region
        $region13: #{tpu_custom_call.1} parent=11 // pred_check
          %p311 = pneg %p177
        $region14: #{tpu_custom_call.1} parent=11 // pred_check_branch
          %313 = sbr.rel (%p311) target = $region16
        $region15: #{tpu_custom_call.1} parent=11 // pred_region
          _
        $region16: #{tpu_custom_call.1} parent=11 // pred_fallthru
          _
        // Predicated region
        $region17: #{tpu_custom_call.1} parent=11 // pred_check
          %p314 = pneg %p198
        $region18: #{tpu_custom_call.1} parent=11 // pred_check_branch
          %316 = sbr.rel (%p314) target = $region20
        $region19: #{tpu_custom_call.1} parent=11 // pred_region
          _
        $region20: #{tpu_custom_call.1} parent=11 // pred_fallthru
          _
        // Predicated region
        $region21: #{tpu_custom_call.1} parent=11 // pred_check
          %p317 = pneg %p219
        $region22: #{tpu_custom_call.1} parent=11 // pred_check_branch
          %319 = sbr.rel (%p317) target = $region24
        $region23: #{tpu_custom_call.1} parent=11 // pred_region
          _
        $region24: #{tpu_custom_call.1} parent=11 // pred_fallthru
          _
        // Predicated region
        $region25: #{tpu_custom_call.1} parent=11 // pred_check
          %p320 = pneg %p240
        $region26: #{tpu_custom_call.1} parent=11 // pred_check_branch
          %322 = sbr.rel (%p320) target = $region28
        $region27: #{tpu_custom_call.1} parent=11 // pred_region
          _
        $region28: #{tpu_custom_call.1} parent=11 // pred_fallthru
          _
      $region12: #{tpu_custom_call.1} parent=5 // pred_fallthru
        _
      %p323 = scmp.lt.s32.totalorder %s28, 4
      // Predicated region
      $region29: #{tpu_custom_call.1} parent=5 // pred_check
        %p324 = pneg %p323
      $region30: #{tpu_custom_call.1} parent=5 // pred_check_branch
        %326 = sbr.rel (%p324) target = $region32
      $region31: #{tpu_custom_call.1} parent=5 // pred_region
        // Predicated region
        $region33: #{tpu_custom_call.1} parent=31 // pred_check
          %p327 = pneg %p62
        $region34: #{tpu_custom_call.1} parent=31 // pred_check_branch
          %329 = sbr.rel (%p327) target = $region36
        $region35: #{tpu_custom_call.1} parent=31 // pred_region
          %s330 = sand.u32 %s52, 1
          %s331 = scalar_lea.sflag [#allocation4], %s330
          %s332 = sand.u32 %s52, 1
          %s333 = smul.addr %s332, 8
          %s334 = scalar_lea.vmem [#allocation3], %s333
          %s336 = ssub.s32 128, 128
          %337 = vsyncadd %s331, %s336
          %s338 = smul.addr %s35, 2
          %s339 = sadd.s32 %s36, %s338
          %s340 = smul.addr %s339, 128
          %s341 = scalar_lea.hbm %s0, %s340
          %s343 = sshll.u32 %s334, 4
          %s344 = int_to_ptr.vmem [resolvable:$true] %s343
          %346 = dma.hbm_to_vmem [thread:$0]  %s341, 128, %s344, %s331
        $region36: #{tpu_custom_call.1} parent=31 // pred_fallthru
          _
        // Predicated region
        $region37: #{tpu_custom_call.1} parent=31 // pred_check
          %p347 = pneg %p96
        $region38: #{tpu_custom_call.1} parent=31 // pred_check_branch
          %349 = sbr.rel (%p347) target = $region40
        $region39: #{tpu_custom_call.1} parent=31 // pred_region
          %s350 = sand.u32 %s86, 1
          %s351 = scalar_lea.sflag [#allocation7], %s350
          %s352 = sand.u32 %s86, 1
          %s353 = smul.addr %s352, 8
          %s354 = scalar_lea.vmem [#allocation6], %s353
          %s355 = ssub.s32 %s36, 1
          %p356 = scmp.gt.s32.totalorder %s355, 0
          %s357 = scalar_select %p356, %s355, 0
          %s359 = ssub.s32 128, 128
          %360 = vsyncadd %s351, %s359
          %s361 = smul.addr %s35, 2
          %s362 = sadd.s32 %s357, %s361
          %s363 = smul.addr %s362, 128
          %s364 = scalar_lea.hbm %s1, %s363
          %s366 = sshll.u32 %s354, 4
          %s367 = int_to_ptr.vmem [resolvable:$true] %s366
          %369 = dma.hbm_to_vmem [thread:$0]  %s364, 128, %s367, %s351
        $region40: #{tpu_custom_call.1} parent=31 // pred_fallthru
          _
        // Predicated region
        $region41: #{tpu_custom_call.1} parent=31 // pred_check
          %p370 = pneg %p124
        $region42: #{tpu_custom_call.1} parent=31 // pred_check_branch
          %372 = sbr.rel (%p370) target = $region44
        $region43: #{tpu_custom_call.1} parent=31 // pred_region
          %p373 = scmp.lt.s32.totalorder %s35, 1
          %s374 = scalar_select %p373, %s35, 1
          %p375 = scmp.lt.s32.totalorder %s36, 1
          %s376 = scalar_select %p375, %s36, 1
          %s377 = smul.addr %s374, 2
          %s378 = sadd.s32 %s376, %s377
          %s379 = smul.addr %s378, 4
          %s380 = scalar_lea.vmem %s2, %s379
        $region44: #{tpu_custom_call.1} parent=31 // pred_fallthru
          _
        // Predicated region
        $region45: #{tpu_custom_call.1} parent=31 // pred_check
          %p381 = pneg %p150
        $region46: #{tpu_custom_call.1} parent=31 // pred_check_branch
          %383 = sbr.rel (%p381) target = $region48
        $region47: #{tpu_custom_call.1} parent=31 // pred_region
          %p384 = scmp.lt.s32.totalorder %s35, 1
          %s385 = scalar_select %p384, %s35, 1
          %s386 = scalar_lea.vmem %s3, %s385
        $region48: #{tpu_custom_call.1} parent=31 // pred_fallthru
          _
      $region32: #{tpu_custom_call.1} parent=5 // pred_fallthru
        _
      %p387 = scmp.le.s32.totalorder 1, %s28
      %p388 = scmp.lt.s32.totalorder %s28, 5
      %p389 = pnand %p387, %p388
      %p390 = pneg %p389
      // Predicated region
      $region49: #{tpu_custom_call.1} parent=5 // pred_check
        _
      $region50: #{tpu_custom_call.1} parent=5 // pred_check_branch
        %392 = sbr.rel (%p389) target = $region52
      $region51: #{tpu_custom_call.1} parent=5 // pred_region
        %s393 = ssub.s32 %s28, 1
        %s394 = sand.u32 %s55, 1
        %s395 = scalar_lea.sflag [#allocation4], %s394
        %s396 = sand.u32 %s55, 1
        %s397 = smul.addr %s396, 8
        %s398 = scalar_lea.vmem [#allocation3], %s397
        // Predicated region
        $region53: #{tpu_custom_call.1} parent=51 // pred_check
          %p399 = pneg %p68
        $region54: #{tpu_custom_call.1} parent=51 // pred_check_branch
          %401 = sbr.rel (%p399) target = $region56
        $region55: #{tpu_custom_call.1} parent=51 // pred_region
          %402 = dma.done %s395, 128
        $region56: #{tpu_custom_call.1} parent=51 // pred_fallthru
          _
        %s403 = sand.u32 %s89, 1
        %s404 = scalar_lea.sflag [#allocation7], %s403
        %s405 = sand.u32 %s89, 1
        %s406 = smul.addr %s405, 8
        %s407 = scalar_lea.vmem [#allocation6], %s406
        // Predicated region
        $region57: #{tpu_custom_call.1} parent=51 // pred_check
          %p408 = pneg %p102
        $region58: #{tpu_custom_call.1} parent=51 // pred_check_branch
          %410 = sbr.rel (%p408) target = $region60
        $region59: #{tpu_custom_call.1} parent=51 // pred_region
          %411 = dma.done %s404, 128
        $region60: #{tpu_custom_call.1} parent=51 // pred_fallthru
          _
        %s412 = sand.u32 %s55, 1
        %s413 = scalar_lea.sflag [#allocation4], %s412
        %s414 = sand.u32 %s55, 1
        %s415 = smul.addr %s414, 8
        %s416 = scalar_lea.vmem [#allocation3], %s415
        %p417 = pneg %p68
        %p418 = pneg %p65
        %s419 = sand.u32 %s89, 1
        %s420 = scalar_lea.sflag [#allocation7], %s419
        %s421 = sand.u32 %s89, 1
        %s422 = smul.addr %s421, 8
        %s423 = scalar_lea.vmem [#allocation6], %s422
        %p424 = pneg %p102
        %p425 = pneg %p99
        %p426 = scmp.lt.s32.totalorder %s37, 1
        %s427 = scalar_select %p426, %s37, 1
        %p428 = scmp.lt.s32.totalorder %s38, 1
        %s429 = scalar_select %p428, %s38, 1
        %s430 = smul.addr %s427, 2
        %s431 = sadd.s32 %s429, %s430
        %s432 = smul.addr %s431, 4
        %s433 = scalar_lea.vmem %s2, %s432
        %p434 = pneg %p130
        %p435 = pneg %p127
        %p436 = scmp.lt.s32.totalorder %s37, 1
        %s437 = scalar_select %p436, %s37, 1
        %s438 = scalar_lea.vmem %s3, %s437
        %p439 = pneg %p156
        %p440 = pneg %p153
        %p441 = pneg %p177
        %p442 = pneg %p174
        %p443 = pneg %p198
        %p444 = pneg %p195
        %p445 = pneg %p219
        %p446 = pneg %p216
        %p447 = pneg %p240
        %p448 = pneg %p237
        %p449 = pneg %p268
        %p450 = pneg %p265
        %s451 = sand.u32 %s255, 1
        %s452 = scalar_lea.sflag [#allocation5], %s451
        %s453 = sand.u32 %s255, 1
        %s454 = smul.addr %s453, 8
        %s455 = scalar_lea.vmem [#allocation8], %s454
        %p456 = pneg %p296
        %p457 = pneg %p293
        %s458 = sand.u32 %s283, 1
        %s459 = scalar_lea.sflag [#allocation10], %s458
        %s460 = sand.u32 %s283, 1
        %s461 = smul.addr %s460, 8
        %s462 = scalar_lea.vmem [#allocation9], %s461
        %s463 = ssub.s32 %s38, 1
        %p464 = scmp.gt.s32.totalorder %s463, 0
        %s465 = scalar_select %p464, %s463, 0
        %p466 = scmp.lt.s32.totalorder %s37, 1
        %s467 = scalar_select %p466, %s37, 1
        %p468 = scmp.lt.s32.totalorder %s38, 1
        %s469 = scalar_select %p468, %s38, 1
        %s470 = smul.addr %s467, 2
        %s471 = sadd.s32 %s469, %s470
        %s472 = smul.addr %s471, 4
        %s473 = scalar_lea.vmem %s2, %s472
        %p474 = scmp.lt.s32.totalorder %s37, 1
        %s475 = scalar_select %p474, %s37, 1
        %s476 = scalar_lea.vmem %s3, %s475
        %v478 = vld [vmem:[%s398] sm:$0xff]
        %v479 = vpack.c.bf16 %v478, %v478
        %v481 = vrot.slane %v479, 4
        %vm483 = vcmask 130052
        %484 = vst.msk [vmem:[#allocation2] sm:$0xf0] %vm483, %v481
        %p485 = scmp.gt.s32.totalorder %s38, 0
        // Predicated region
        $region61: #{tpu_custom_call.1} parent=51 // pred_check
          %p486 = pneg %p485
        $region62: #{tpu_custom_call.1} parent=51 // pred_check_branch
          %488 = sbr.rel (%p486) target = $region64
        $region63: #{tpu_custom_call.1} parent=51 // pred_region
          %v489 = vld [vmem:[%s407 + $0x4] sm:$0xf]
          %v490 = vpack.c.bf16 %v489, %v489
          %v492 = vrot.slane %v490, 6
          %vm494 = vcmask 125954
          %495 = vst.msk [vmem:[#allocation2] sm:$0xc] %vm494, %v492
        $region64: #{tpu_custom_call.1} parent=51 // pred_fallthru
          _
        %p496 = scmp.eq.s32.totalorder %s38, 0
        // Predicated region
        $region65: #{tpu_custom_call.1} parent=51 // pred_check
          %p497 = pneg %p496
        $region66: #{tpu_custom_call.1} parent=51 // pred_check_branch
          %499 = sbr.rel (%p497) target = $region68
        $region67: #{tpu_custom_call.1} parent=51 // pred_region
          %vm500 = vcmask 125954
          %501 = vst.msk [vmem:[#allocation2] sm:$0xc] %vm500, 0
        $region68: #{tpu_custom_call.1} parent=51 // pred_fallthru
          _
        %v502 = vld [vmem:[%s473] sm:$0xf]
        %v503 = vld [vmem:[%s5] sm:$0xf]
        %v504 = vld [vmem:[#allocation2] sm:$0x3c]
        %v505 = vld [vmem:[#allocation2] sm:$0x78]
        %v506 = vld [vmem:[#allocation2] sm:$0xf0]
        %v507 = vld [vmem:[%s4] sm:$0xf]
        %v508 = vld [vmem:[%s4 + $0x4] sm:$0xf]
        %v510 = vrot.slane %v504, 2
        %v513 = vunpack.c.l.b16 %v507
        %v514 = vunpack.c.l.b16 %v508
        %v515 = vpack.c.b16 %v514, %v513
        %vm517 = vcmask 130048
        %v519 = vsel %vm517, %v510, 0
        %521 = vmatprep.subr.bf16.mxu0 0
        %522 = vmatpush1.bf16.msra.mxu0 %v515
        %523 = vmatprep.subr.bf16.mxu0 0
        %524 = vmatpush1.bf16.msra.mxu0 0
        %525 = vmatprep.subr.bf16.mxu0 0
        %526 = vmatpush1.bf16.msra.mxu0 0
        %527 = vmatprep.subr.bf16.mxu0 0
        %528 = vmatpush1.bf16.msra.mxu0 0
        %529 = vmatprep.subr.bf16.mxu0 0
        %530 = vmatpush1.bf16.msra.mxu0 0
        %531 = vmatprep.subr.bf16.mxu0 0
        %532 = vmatpush1.bf16.msra.mxu0 0
        %533 = vmatprep.subr.bf16.mxu0 0
        %534 = vmatpush1.bf16.msra.mxu0 0
        %535 = vmatprep.subr.bf16.mxu0 0
        %536 = vmatpush1.bf16.msra.mxu0 0
        %537 = vmatprep.subr.bf16.mxu0 0
        %538 = vmatpush1.bf16.msra.mxu0 0
        %539 = vmatprep.subr.bf16.mxu0 0
        %540 = vmatpush1.bf16.msra.mxu0 0
        %541 = vmatprep.subr.bf16.mxu0 0
        %542 = vmatpush1.bf16.msra.mxu0 0
        %543 = vmatprep.subr.bf16.mxu0 0
        %544 = vmatpush1.bf16.msra.mxu0 0
        %545 = vmatprep.subr.bf16.mxu0 0
        %546 = vmatpush1.bf16.msra.mxu0 0
        %547 = vmatprep.subr.bf16.mxu0 0
        %548 = vmatpush1.bf16.msra.mxu0 0
        %549 = vmatprep.subr.bf16.mxu0 0
        %550 = vmatpush1.bf16.msra.mxu0 0
        %551 = vmatprep.subr.bf16.mxu0 0
        %552 = vmatpush1.bf16.msra.mxu0 0
        %553 = vmatprep.mubr.bf16.mxu0 0
        %554 = vmatmul.mubr.bf16.gmra.mrb[0].mxu0 %v519
        %v555 = vpop.f32.mrb[0].mxu0
        %v556 = vadd.f32 0.0, %v555
        %v557 = vpop.f32.mrb[0].mxu0
        %v558 = vpop.f32.mrb[0].mxu0
        %v559 = vpop.f32.mrb[0].mxu0
        %560 = vdwg.mxu0
        %vm561 = vcmask 64512
        %v563 = vsel %vm561, %v502, 0
        %vm565 = vcmask 1043456
        %v567 = vsel %vm565, %v503, 0
        %569 = vmatprep.subr.bf16.mxu0 0
        %570 = vmatpush1.bf16.msra.mxu0 %v567
        %571 = vmatprep.subr.bf16.mxu0 0
        %572 = vmatpush1.bf16.msra.mxu0 0
        %573 = vmatprep.subr.bf16.mxu0 0
        %574 = vmatpush1.bf16.msra.mxu0 0
        %575 = vmatprep.subr.bf16.mxu0 0
        %576 = vmatpush1.bf16.msra.mxu0 0
        %577 = vmatprep.subr.bf16.mxu0 0
        %578 = vmatpush1.bf16.msra.mxu0 0
        %579 = vmatprep.subr.bf16.mxu0 0
        %580 = vmatpush1.bf16.msra.mxu0 0
        %581 = vmatprep.subr.bf16.mxu0 0
        %582 = vmatpush1.bf16.msra.mxu0 0
        %583 = vmatprep.subr.bf16.mxu0 0
        %584 = vmatpush1.bf16.msra.mxu0 0
        %585 = vmatprep.subr.bf16.mxu0 0
        %586 = vmatpush1.bf16.msra.mxu0 0
        %587 = vmatprep.subr.bf16.mxu0 0
        %588 = vmatpush1.bf16.msra.mxu0 0
        %589 = vmatprep.subr.bf16.mxu0 0
        %590 = vmatpush1.bf16.msra.mxu0 0
        %591 = vmatprep.subr.bf16.mxu0 0
        %592 = vmatpush1.bf16.msra.mxu0 0
        %593 = vmatprep.subr.bf16.mxu0 0
        %594 = vmatpush1.bf16.msra.mxu0 0
        %595 = vmatprep.subr.bf16.mxu0 0
        %596 = vmatpush1.bf16.msra.mxu0 0
        %597 = vmatprep.subr.bf16.mxu0 0
        %598 = vmatpush1.bf16.msra.mxu0 0
        %599 = vmatprep.subr.bf16.mxu0 0
        %600 = vmatpush1.bf16.msra.mxu0 0
        %601 = vmatprep.mubr.bf16.mxu0 0
        %602 = vmatmul.mubr.bf16.gmra.mrb[0].mxu0 %v563
        %v603 = vpop.f32.mrb[0].mxu0
        %v604 = vadd.f32 %v556, %v603
        %v605 = vpop.f32.mrb[0].mxu0
        %v606 = vpop.f32.mrb[0].mxu0
        %v607 = vpop.f32.mrb[0].mxu0
        %608 = vdwg.mxu0
        %s609 = scalar_lea.vmem %s4, 8
        %v610 = vld [vmem:[%s609] sm:$0xf]
        %v611 = vld [vmem:[%s609 + $0x4] sm:$0xf]
        %v613 = vrot.slane %v505, 3
        %v616 = vunpack.c.l.b16 %v610
        %v617 = vunpack.c.l.b16 %v611
        %v618 = vpack.c.b16 %v617, %v616
        %v621 = vsel %vm517, %v613, 0
        %623 = vmatprep.subr.bf16.mxu0 0
        %624 = vmatpush1.bf16.msra.mxu0 %v618
        %625 = vmatprep.subr.bf16.mxu0 0
        %626 = vmatpush1.bf16.msra.mxu0 0
        %627 = vmatprep.subr.bf16.mxu0 0
        %628 = vmatpush1.bf16.msra.mxu0 0
        %629 = vmatprep.subr.bf16.mxu0 0
        %630 = vmatpush1.bf16.msra.mxu0 0
        %631 = vmatprep.subr.bf16.mxu0 0
        %632 = vmatpush1.bf16.msra.mxu0 0
        %633 = vmatprep.subr.bf16.mxu0 0
        %634 = vmatpush1.bf16.msra.mxu0 0
        %635 = vmatprep.subr.bf16.mxu0 0
        %636 = vmatpush1.bf16.msra.mxu0 0
        %637 = vmatprep.subr.bf16.mxu0 0
        %638 = vmatpush1.bf16.msra.mxu0 0
        %639 = vmatprep.subr.bf16.mxu0 0
        %640 = vmatpush1.bf16.msra.mxu0 0
        %641 = vmatprep.subr.bf16.mxu0 0
        %642 = vmatpush1.bf16.msra.mxu0 0
        %643 = vmatprep.subr.bf16.mxu0 0
        %644 = vmatpush1.bf16.msra.mxu0 0
        %645 = vmatprep.subr.bf16.mxu0 0
        %646 = vmatpush1.bf16.msra.mxu0 0
        %647 = vmatprep.subr.bf16.mxu0 0
        %648 = vmatpush1.bf16.msra.mxu0 0
        %649 = vmatprep.subr.bf16.mxu0 0
        %650 = vmatpush1.bf16.msra.mxu0 0
        %651 = vmatprep.subr.bf16.mxu0 0
        %652 = vmatpush1.bf16.msra.mxu0 0
        %653 = vmatprep.subr.bf16.mxu0 0
        %654 = vmatpush1.bf16.msra.mxu0 0
        %655 = vmatprep.mubr.bf16.mxu0 0
        %656 = vmatmul.mubr.bf16.gmra.mrb[0].mxu0 %v621
        %v657 = vpop.f32.mrb[0].mxu0
        %v658 = vadd.f32 0.0, %v657
        %v659 = vpop.f32.mrb[0].mxu0
        %v660 = vpop.f32.mrb[0].mxu0
        %v661 = vpop.f32.mrb[0].mxu0
        %662 = vdwg.mxu0
        %v663 = vadd.f32 %v604, %v658
        %s664 = scalar_lea.vmem %s4, 16
        %v665 = vld [vmem:[%s664] sm:$0xf]
        %v666 = vld [vmem:[%s664 + $0x4] sm:$0xf]
        %v668 = vrot.slane %v506, 4
        %v671 = vunpack.c.l.b16 %v665
        %v672 = vunpack.c.l.b16 %v666
        %v673 = vpack.c.b16 %v672, %v671
        %v676 = vsel %vm517, %v668, 0
        %678 = vmatprep.subr.bf16.mxu0 0
        %679 = vmatpush1.bf16.msra.mxu0 %v673
        %680 = vmatprep.subr.bf16.mxu0 0
        %681 = vmatpush1.bf16.msra.mxu0 0
        %682 = vmatprep.subr.bf16.mxu0 0
        %683 = vmatpush1.bf16.msra.mxu0 0
        %684 = vmatprep.subr.bf16.mxu0 0
        %685 = vmatpush1.bf16.msra.mxu0 0
        %686 = vmatprep.subr.bf16.mxu0 0
        %687 = vmatpush1.bf16.msra.mxu0 0
        %688 = vmatprep.subr.bf16.mxu0 0
        %689 = vmatpush1.bf16.msra.mxu0 0
        %690 = vmatprep.subr.bf16.mxu0 0
        %691 = vmatpush1.bf16.msra.mxu0 0
        %692 = vmatprep.subr.bf16.mxu0 0
        %693 = vmatpush1.bf16.msra.mxu0 0
        %694 = vmatprep.subr.bf16.mxu0 0
        %695 = vmatpush1.bf16.msra.mxu0 0
        %696 = vmatprep.subr.bf16.mxu0 0
        %697 = vmatpush1.bf16.msra.mxu0 0
        %698 = vmatprep.subr.bf16.mxu0 0
        %699 = vmatpush1.bf16.msra.mxu0 0
        %700 = vmatprep.subr.bf16.mxu0 0
        %701 = vmatpush1.bf16.msra.mxu0 0
        %702 = vmatprep.subr.bf16.mxu0 0
        %703 = vmatpush1.bf16.msra.mxu0 0
        %704 = vmatprep.subr.bf16.mxu0 0
        %705 = vmatpush1.bf16.msra.mxu0 0
        %706 = vmatprep.subr.bf16.mxu0 0
        %707 = vmatpush1.bf16.msra.mxu0 0
        %708 = vmatprep.subr.bf16.mxu0 0
        %709 = vmatpush1.bf16.msra.mxu0 0
        %710 = vmatprep.mubr.bf16.mxu0 0
        %711 = vmatmul.mubr.bf16.gmra.mrb[0].mxu0 %v676
        %v712 = vpop.f32.mrb[0].mxu0
        %v713 = vadd.f32 0.0, %v712
        %v714 = vpop.f32.mrb[0].mxu0
        %v715 = vpop.f32.mrb[0].mxu0
        %v716 = vpop.f32.mrb[0].mxu0
        %717 = vdwg.mxu0
        %v718 = vadd.f32 %v663, %v713
        %v719 = vld [vmem:[%s476] sm:$0x1]
        %v721 = vlaneseq
        %v722 = vshrl.u32 %v721, 7
        %v723 = vsub.s32 0, %v722
        %v724 = vrot.slane %v719, %v723
        %v726 = vadd.f32 %v718, %v724
        %v727 = vtanh.pop %v726
        %v728 = vxor.u32 %v726, 2147483648
        %v729 = vmul.f32 %v728, 1.442695
        %v730 = vpow.pop %v729
        %v731 = vadd.f32 %v730, 1.0
        %v732 = vrcp.pop %v731
        %v733 = vmul.f32 1.0, %v732
        %735 = vrot.lane.b32.xlu0 %v733, 112
        %v736 = vpop.permute.xlu0 %735
        %v738 = vmul.f32 %v727, %v736
        %v739 = vpack.c.bf16 %v738, %v738
        %v740 = vld [vmem:[%s6] sm:$0xf]
        %v741 = vld [vmem:[%s6 + $0x4] sm:$0xf]
        %v742 = vld [vmem:[%s7] sm:$0x1]
        %v744 = vlaneseq
        %v745 = vshrl.u32 %v744, 7
        %v746 = vsub.s32 0, %v745
        %v747 = vrot.slane %v742, %v746
        %v751 = vunpack.c.l.b16 %v740
        %v752 = vunpack.c.l.b16 %v741
        %v753 = vpack.c.b16 %v752, %v751
        %v756 = vsel %vm517, %v739, 0
        %758 = vmatprep.subr.bf16.mxu0 0
        %759 = vmatpush1.bf16.msra.mxu0 %v753
        %760 = vmatprep.subr.bf16.mxu0 0
        %761 = vmatpush1.bf16.msra.mxu0 0
        %762 = vmatprep.subr.bf16.mxu0 0
        %763 = vmatpush1.bf16.msra.mxu0 0
        %764 = vmatprep.subr.bf16.mxu0 0
        %765 = vmatpush1.bf16.msra.mxu0 0
        %766 = vmatprep.subr.bf16.mxu0 0
        %767 = vmatpush1.bf16.msra.mxu0 0
        %768 = vmatprep.subr.bf16.mxu0 0
        %769 = vmatpush1.bf16.msra.mxu0 0
        %770 = vmatprep.subr.bf16.mxu0 0
        %771 = vmatpush1.bf16.msra.mxu0 0
        %772 = vmatprep.subr.bf16.mxu0 0
        %773 = vmatpush1.bf16.msra.mxu0 0
        %774 = vmatprep.subr.bf16.mxu0 0
        %775 = vmatpush1.bf16.msra.mxu0 0
        %776 = vmatprep.subr.bf16.mxu0 0
        %777 = vmatpush1.bf16.msra.mxu0 0
        %778 = vmatprep.subr.bf16.mxu0 0
        %779 = vmatpush1.bf16.msra.mxu0 0
        %780 = vmatprep.subr.bf16.mxu0 0
        %781 = vmatpush1.bf16.msra.mxu0 0
        %782 = vmatprep.subr.bf16.mxu0 0
        %783 = vmatpush1.bf16.msra.mxu0 0
        %784 = vmatprep.subr.bf16.mxu0 0
        %785 = vmatpush1.bf16.msra.mxu0 0
        %786 = vmatprep.subr.bf16.mxu0 0
        %787 = vmatpush1.bf16.msra.mxu0 0
        %788 = vmatprep.subr.bf16.mxu0 0
        %789 = vmatpush1.bf16.msra.mxu0 0
        %790 = vmatprep.mubr.bf16.mxu0 0
        %791 = vmatmul.mubr.bf16.gmra.mrb[0].mxu0 %v756
        %v792 = vpop.f32.mrb[0].mxu0
        %v793 = vadd.f32 %v747, %v792
        %v794 = vpop.f32.mrb[0].mxu0
        %v795 = vpop.f32.mrb[0].mxu0
        %v796 = vpop.f32.mrb[0].mxu0
        %797 = vdwg.mxu0
        %799 = vrot.lane.b32.xlu0 %v478, 16
        %v800 = vpop.permute.xlu0 %799
        %v802 = vadd.f32 %v793, %v800
        %v803 = vmul.f32 %v802, 0.70710677
        %805 = vrot.lane.b32.xlu0 %v803, 112
        %v806 = vpop.permute.xlu0 %805
        %808 = vst.msk [vmem:[%s455] sm:$0xff] %vm517, %v806
        %809 = vst.msk [vmem:[%s462] sm:$0xff] %vm517, %v793
        %s810 = sand.u32 %s255, 1
        %s811 = scalar_lea.sflag [#allocation5], %s810
        %s812 = sand.u32 %s255, 1
        %s813 = smul.addr %s812, 8
        %s814 = scalar_lea.vmem [#allocation8], %s813
        %s815 = sand.u32 %s283, 1
        %s816 = scalar_lea.sflag [#allocation10], %s815
        %s817 = sand.u32 %s283, 1
        %s818 = smul.addr %s817, 8
        %s819 = scalar_lea.vmem [#allocation9], %s818
        // Predicated region
        $region69: #{tpu_custom_call.1} parent=51 // pred_check
          %p820 = pneg %p265
        $region70: #{tpu_custom_call.1} parent=51 // pred_check_branch
          %822 = sbr.rel (%p820) target = $region72
        $region71: #{tpu_custom_call.1} parent=51 // pred_region
          %s824 = ssub.s32 128, 128
          %825 = vsyncadd %s811, %s824
          %s826 = smul.addr %s37, 2
          %s827 = sadd.s32 %s38, %s826
          %s828 = smul.addr %s827, 128
          %s829 = scalar_lea.hbm %s8, %s828
          %s831 = sshll.u32 %s814, 4
          %s832 = int_to_ptr.vmem [resolvable:$true] %s831
          %834 = dma.vmem_to_hbm [thread:$0]  %s832, 128, %s829, %s811
        $region72: #{tpu_custom_call.1} parent=51 // pred_fallthru
          _
        // Predicated region
        $region73: #{tpu_custom_call.1} parent=51 // pred_check
          %p835 = pneg %p293
        $region74: #{tpu_custom_call.1} parent=51 // pred_check_branch
          %837 = sbr.rel (%p835) target = $region76
        $region75: #{tpu_custom_call.1} parent=51 // pred_region
          %s839 = ssub.s32 128, 128
          %840 = vsyncadd %s816, %s839
          %s841 = smul.addr %s37, 2
          %s842 = sadd.s32 %s38, %s841
          %s843 = smul.addr %s842, 128
          %s844 = scalar_lea.hbm %s9, %s843
          %s846 = sshll.u32 %s819, 4
          %s847 = int_to_ptr.vmem [resolvable:$true] %s846
          %849 = dma.vmem_to_hbm [thread:$0]  %s847, 128, %s844, %s816
        $region76: #{tpu_custom_call.1} parent=51 // pred_fallthru
          _
      $region52: #{tpu_custom_call.1} parent=5 // pred_fallthru
        _
      %p850 = scmp.le.s32.totalorder 2, %s28
      // Predicated region
      $region77: #{tpu_custom_call.1} parent=5 // pred_check
        %p851 = pneg %p850
      $region78: #{tpu_custom_call.1} parent=5 // pred_check_branch
        %853 = sbr.rel (%p851) target = $region80
      $region79: #{tpu_custom_call.1} parent=5 // pred_region
        %s854 = ssub.s32 %s28, 2
        // Predicated region
        $region81: #{tpu_custom_call.1} parent=79 // pred_check
          %p855 = pneg %p271
        $region82: #{tpu_custom_call.1} parent=79 // pred_check_branch
          %857 = sbr.rel (%p855) target = $region84
        $region83: #{tpu_custom_call.1} parent=79 // pred_region
          %s858 = sand.u32 %s256, 1
          %s859 = scalar_lea.sflag [#allocation5], %s858
          %s860 = sand.u32 %s256, 1
          %s861 = smul.addr %s860, 8
          %s862 = scalar_lea.vmem [#allocation8], %s861
          %863 = dma.done %s859, 128
        $region84: #{tpu_custom_call.1} parent=79 // pred_fallthru
          _
        // Predicated region
        $region85: #{tpu_custom_call.1} parent=79 // pred_check
          %p864 = pneg %p299
        $region86: #{tpu_custom_call.1} parent=79 // pred_check_branch
          %866 = sbr.rel (%p864) target = $region88
        $region87: #{tpu_custom_call.1} parent=79 // pred_region
          %s867 = sand.u32 %s284, 1
          %s868 = scalar_lea.sflag [#allocation10], %s867
          %s869 = sand.u32 %s284, 1
          %s870 = smul.addr %s869, 8
          %s871 = scalar_lea.vmem [#allocation9], %s870
          %872 = dma.done %s868, 128
        $region88: #{tpu_custom_call.1} parent=79 // pred_fallthru
          _
      $region80: #{tpu_custom_call.1} parent=5 // pred_fallthru
        _
    $region6: #{tpu_custom_call.1} parent=1 // loop_footer
      %s32 = sadd.s32 1, %s28
    $region7: #{tpu_custom_call.1} parent=1 // loop_footer_branch
      %27 = sbr.rel target = $region3
    $region8: #{tpu_custom_call.1} parent=1 // loop_exit
      _
    %873 = vsyncpa [#allocation4], 1
    %s874 = scalar_lea.sflag [#allocation4], 1
    %875 = vsyncpa %s874, 1
    %876 = vsyncpa [#allocation7], 1
    %s877 = scalar_lea.sflag [#allocation7], 1
    %878 = vsyncpa %s877, 1
    %879 = vsyncpa [#allocation5], 1
    %s880 = scalar_lea.sflag [#allocation5], 1
    %881 = vsyncpa %s880, 1
    %882 = vsyncpa [#allocation10], 1
    %s883 = scalar_lea.sflag [#allocation10], 1
    %884 = vsyncpa %s883, 1

</llo_original>
